<compile_context>
chip_gen: v6e
topology: v6e:2x2x1
jax: 0.10.0
libtpu: 0.0.40
codegen_flags: <defaults>
</compile_context>

<pallas_src>
import jax
import jax.numpy as jnp
from jax.experimental import pallas as pl
from jax.experimental.pallas import tpu as pltpu


def _hsigmoid_kernel(x_ref, o_ref):
    # relu6(x + 3) / 6  == clamp(x + 3, 0, 6) / 6
    o_ref[...] = (jnp.clip(x_ref[...] + 3.0, 0.0, 6.0) / 6.0).astype(o_ref.dtype)


def hsigmoid(
    x,
    *,
    cols=1024,
    target_block_bytes=8 * 1024 * 1024,
    min_pallas_bytes=512 * 1024,
    min_split_bytes=1 * 1024 * 1024,
    donate=False,
):
    """Elementwise hard sigmoid via a Pallas TPU kernel.

    Works for any input shape; internally flattens to a lane-dense
    (rows, cols) 2D slab (cols a multiple of 128). Aligned sizes need no
    pad/crop; Pallas masks the ragged final row-block.
    """
    assert cols % 128 == 0, "cols must be a multiple of 128 (lane width)"
    orig_shape = x.shape
    dtype = x.dtype
    n = x.size
    if n == 0:
        return x

    itemsize = jnp.dtype(dtype).itemsize
    nbytes = n * itemsize

    # Tiny inputs: launch + wrapper overhead dominates; XLA's fused
    # elementwise hits the same HBM roofline with zero fixed cost.
    if nbytes < min_pallas_bytes:
        return (jnp.clip(x + 3.0, 0.0, 6.0) / 6.0).astype(dtype)

    # Sublane packing multiple: 8 (f32), 16 (bf16/f16), 32 (int8/fp8).
    sublane = max(8, 32 // itemsize)

    rows = pl.cdiv(n, cols)

    # Block rows from the byte budget, rounded to a sublane multiple.
    block_rows = max(
        sublane, (target_block_bytes // (cols * itemsize)) // sublane * sublane
    )

    if nbytes >= min_split_bytes:
        # Guarantee >= 4 grid steps: pipelined DMA/compute overlap and work
        # for both v7x TensorCores ("parallel" grid axis).
        br_split = pl.cdiv(pl.cdiv(rows, 4), sublane) * sublane
        block_rows = max(sublane, min(block_rows, br_split))

    if block_rows >= rows:
        # Single block covering all rows: "block dim == full array dim" is
        # exempt from the sublane-multiple rule, so no row padding needed.
        block_rows = rows

    # Free reshape when n is a multiple of cols; otherwise pad only the
    # sub-`cols` tail (< cols elements) once and crop once on the way out.
    x_flat = jnp.ravel(x)
    total = rows * cols
    padded = total != n
    if padded:
        x_flat = jnp.pad(x_flat, (0, total - n))
    x2d = x_flat.reshape(rows, cols)

    grid = (pl.cdiv(rows, block_rows),)

    io_alias = {0: 0} if (donate and not padded) else {}

    out2d = pl.pallas_call(
        _hsigmoid_kernel,
        out_shape=jax.ShapeDtypeStruct((rows, cols), dtype),
        grid=grid,
        in_specs=[pl.BlockSpec((block_rows, cols), lambda i: (i, 0))],
        out_specs=pl.BlockSpec((block_rows, cols), lambda i: (i, 0)),
        compiler_params=pltpu.CompilerParams(
            dimension_semantics=("parallel",),
            vmem_limit_bytes=48 * 1024 * 1024,
        ),
        input_output_aliases=io_alias,
    )(x2d)

    out_flat = out2d.reshape(-1)
    if padded:
        out_flat = out_flat[:n]
    return out_flat.reshape(orig_shape)


def hsigmoid_ref(x):
    # Pure-JAX reference matching torch: F.relu6(x + 3.0) / 6.0
    return jnp.clip(x + 3.0, 0.0, 6.0) / 6.0


if __name__ == "__main__":
    key = jax.random.PRNGKey(0)
    k1, k2, k3, k4, k5 = jax.random.split(key, 5)

    # 1) Small NCHW feature map (module-consistent shape); force the Pallas
    #    path (single block == full array dims).
    x1 = jax.random.normal(k1, (2, 4, 16, 16), dtype=jnp.float32) * 4.0
    y1 = jax.block_until_ready(hsigmoid(x1, min_pallas_bytes=0))
    assert y1.shape == x1.shape and y1.dtype == x1.dtype
    assert jnp.allclose(y1, hsigmoid_ref(x1), atol=1e-6, rtol=1e-6)

    # 2) Same small input through the default tiny-input jnp fallback.
    y1b = jax.block_until_ready(hsigmoid(x1))
    assert jnp.allclose(y1b, hsigmoid_ref(x1), atol=1e-6, rtol=1e-6)

    # 3) Multi-block path (grid > 1), aligned size, no pad/crop.
    x2 = jax.random.normal(k2, (2, 8, 32, 32), dtype=jnp.float32) * 4.0
    y2 = jax.block_until_ready(
        hsigmoid(x2, min_pallas_bytes=0, min_split_bytes=0,
                 target_block_bytes=64 * 1024))
    assert jnp.allclose(y2, hsigmoid_ref(x2), atol=1e-6, rtol=1e-6)

    # 4) Ragged final row-block (rows=20, block_rows=8 -> grid=3, last block
    #    masked by Pallas; still no pad/crop since n % cols == 0).
    x3 = jax.random.normal(k3, (2, 10, 32, 32), dtype=jnp.float32) * 4.0
    y3 = jax.block_until_ready(
        hsigmoid(x3, min_pallas_bytes=0, min_split_bytes=0,
                 target_block_bytes=64 * 1024))
    assert jnp.allclose(y3, hsigmoid_ref(x3), atol=1e-6, rtol=1e-6)

    # 5) Unaligned size (n % cols != 0): sub-cols tail pad + crop path.
    x4 = jax.random.normal(k4, (3, 5, 7, 11), dtype=jnp.float32) * 4.0
    y4 = jax.block_until_ready(hsigmoid(x4, min_pallas_bytes=0))
    assert y4.shape == x4.shape
    assert jnp.allclose(y4, hsigmoid_ref(x4), atol=1e-6, rtol=1e-6)

    # 6) bf16 (dtype-aware sublane multiple of 16).
    x5 = (jax.random.normal(k5, (2, 8, 32, 32), dtype=jnp.float32) * 4.0
          ).astype(jnp.bfloat16)
    y5 = jax.block_until_ready(hsigmoid(x5, min_pallas_bytes=0))
    assert y5.dtype == jnp.bfloat16 and y5.shape == x5.shape
    assert jnp.allclose(y5.astype(jnp.float32),
                        hsigmoid_ref(x5).astype(jnp.float32),
                        atol=1e-2, rtol=1e-2)

    print("KERNEL_OK")
</pallas_src>

<mosaic_0001>
module attributes {stable_mosaic.version = 11 : i64} {
  func.func @_hsigmoid_kernel(%arg0: i32, %arg1: memref<2x1024xf32, #tpu.memory_space<vmem>>, %arg2: memref<2x1024xf32, #tpu.memory_space<vmem>>) attributes {dimension_semantics = [#tpu.dimension_semantics<parallel>], iteration_bounds = array<i64: 1>, scalar_prefetch = 0 : i64, scratch_operands = 0 : i64, tpu.core_type = #tpu.core_type<tc>, window_params = [{transform_indices = @transform_0, window_bounds = array<i64: 2, 1024>}, {transform_indices = @transform_1, window_bounds = array<i64: 2, 1024>}]} {
    %c0 = arith.constant 0 : index
    %c0_0 = arith.constant 0 : index
    %0 = vector.load %arg1[%c0, %c0_0] : memref<2x1024xf32, #tpu.memory_space<vmem>>, vector<2x1024xf32>
    %cst = arith.constant 3.000000e+00 : f32
    %1 = vector.broadcast %cst : f32 to vector<2x1024xf32>
    %2 = arith.addf %0, %1 : vector<2x1024xf32>
    %cst_1 = arith.constant 0.000000e+00 : f32
    %cst_2 = arith.constant 6.000000e+00 : f32
    %3 = vector.broadcast %cst_1 : f32 to vector<2x1024xf32>
    %4 = arith.maximumf %3, %2 : vector<2x1024xf32>
    %5 = vector.broadcast %cst_2 : f32 to vector<2x1024xf32>
    %6 = arith.minimumf %5, %4 : vector<2x1024xf32>
    %cst_3 = arith.constant 6.000000e+00 : f32
    %7 = vector.broadcast %cst_3 : f32 to vector<2x1024xf32>
    %8 = arith.divf %6, %7 : vector<2x1024xf32>
    %c0_4 = arith.constant 0 : index
    %c0_5 = arith.constant 0 : index
    %9 = vector.load %arg2[%c0_4, %c0_5] : memref<2x1024xf32, #tpu.memory_space<vmem>>, vector<2x1024xf32>
    tpu.vector_store %arg2[%c0_4, %c0_5], %8 {strides = array<i32>} : memref<2x1024xf32, #tpu.memory_space<vmem>>, vector<2x1024xf32>,
    return
  }
  func.func @transform_0(%arg0: i32) -> (i32, i32) {
    %c0_i32 = arith.constant 0 : i32
    %c0_i32_0 = arith.constant 0 : i32
    return %arg0, %c0_i32 : i32, i32
  }
  func.func @transform_1(%arg0: i32) -> (i32, i32) {
    %c0_i32 = arith.constant 0 : i32
    %c0_i32_0 = arith.constant 0 : i32
    return %arg0, %c0_i32 : i32, i32
  }
}

</mosaic_0001>

<llo_original>
// kernel: tpu_custom_call.1
$region0: #{tpu_custom_call.1}
  #allocation0 [shape = 'u32[]', space=smem, size = 0x4, offset = 0x4, fixed_abs, tag = 'smem constant byte address 0x4 - core index']
  #allocation1 [shape = 'u32[144,128]{1,0:T(1,128)}', space=vmem, size = 0x12000, scoped, tag = 'internal scratch']
  %s0 = inlined_call_operand.hbm [shape: f32[2,1024], index: 0, kind: input, shape index: {}]
  %s1 = inlined_call_operand.hbm [shape: f32[2,1024], index: 1, kind: output, shape index: {}]
  %s2 = sld [smem:[#allocation0]]
  $region18: #{tpu_custom_call.1} parent=0
    _
  %s4 = ssub.s32 1, %s2
  %s5 = scalar_select 0, %s4, %s2
  $region1: #{tpu_custom_call.1} parent=0
    #allocation2 [shape = 'u8[8192]{0}', space=vmem, size = 0x2000, scoped, tag = 'input window, operand 0, single buffered']
    #allocation3 [shape = 's32[1]{0}', space=sflag, size = 0x4, scoped, tag = 'scoped memory for tpu_custom_call.1']
    #allocation4 [shape = 's32[1]{0}', space=sflag, size = 0x4, scoped, tag = 'scoped memory for tpu_custom_call.1']
    #allocation5 [shape = 'u8[8192]{0}', space=vmem, size = 0x2000, scoped, tag = 'output window, operand 0, single buffered']
    %6 = vsyncpa [#allocation3], 0
    %7 = vsyncpa [#allocation4], 0
    // Predicated region
    $region2: #{tpu_custom_call.1} parent=1 // pred_check
      _
    $region3: #{tpu_custom_call.1} parent=1 // pred_check_branch
      %9 = sbr.rel (0) target = $region5
    $region4: #{tpu_custom_call.1} parent=1 // pred_region
      %s11 = ssub.s32 256, 256
      %12 = vsyncadd [#allocation3], %s11
      %s14 = sshll.u32 [#allocation2], 4
      %s15 = int_to_ptr.vmem [resolvable:$true] %s14
      %17 = dma.hbm_to_vmem [thread:$0]  %s0, 256, %s15, [#allocation3]
    $region5: #{tpu_custom_call.1} parent=1 // pred_fallthru
      _
    // Predicated region
    $region6: #{tpu_custom_call.1} parent=1 // pred_check
      _
    $region7: #{tpu_custom_call.1} parent=1 // pred_check_branch
      %19 = sbr.rel (0) target = $region9
    $region8: #{tpu_custom_call.1} parent=1 // pred_region
      %20 = dma.done [#allocation3], 256
    $region9: #{tpu_custom_call.1} parent=1 // pred_fallthru
      _
    %v21 = vld [vmem:[#allocation2] sm:$0xff]
    %v22 = vld [vmem:[#allocation2 + $0x8] sm:$0xff]
    %v23 = vadd.f32 %v21, 3.0
    %v24 = vadd.f32 %v22, 3.0
    %v25 = vmax.f32 %v23, 0.0
    %v26 = vmax.f32 %v24, 0.0
    %v27 = vmin.f32 %v25, 6.0
    %v28 = vmin.f32 %v26, 6.0
    %v29 = vrcp.pop 6.0
    %v30 = vmul.f32 %v27, %v29
    %v31 = vmul.f32 %v28, %v29
    %32 = vst [vmem:[#allocation5] sm:$0xff] %v30
    %33 = vst [vmem:[#allocation5 + $0x8] sm:$0xff] %v31
    // Predicated region
    $region10: #{tpu_custom_call.1} parent=1 // pred_check
      _
    $region11: #{tpu_custom_call.1} parent=1 // pred_check_branch
      %35 = sbr.rel (0) target = $region13
    $region12: #{tpu_custom_call.1} parent=1 // pred_region
      %s37 = ssub.s32 256, 256
      %38 = vsyncadd [#allocation4], %s37
      %s40 = sshll.u32 [#allocation5], 4
      %s41 = int_to_ptr.vmem [resolvable:$true] %s40
      %43 = dma.vmem_to_hbm [thread:$0]  %s41, 256, %s1, [#allocation4]
    $region13: #{tpu_custom_call.1} parent=1 // pred_fallthru
      _
    // Predicated region
    $region14: #{tpu_custom_call.1} parent=1 // pred_check
      _
    $region15: #{tpu_custom_call.1} parent=1 // pred_check_branch
      %45 = sbr.rel (0) target = $region17
    $region16: #{tpu_custom_call.1} parent=1 // pred_region
      %46 = dma.done [#allocation4], 256
    $region17: #{tpu_custom_call.1} parent=1 // pred_fallthru
      _
    %47 = vsyncpa [#allocation3], 1
    %48 = vsyncpa [#allocation4], 1

</llo_original>
